<compile_context>
chip_gen: v6e
topology: v6e:2x2x1
jax: 0.10.0
libtpu: 0.0.40
codegen_flags: <defaults>
</compile_context>

<pallas_src>
import functools

import jax
import jax.numpy as jnp
from jax.experimental import pallas as pl
from jax.experimental.pallas import tpu as pltpu

_FAR = 1e30  # depth sentinel for "no neighbouring in-bounds point"


def _pick_tile(n, multiple, max_tile):
    """Largest divisor of n that is a multiple of `multiple` and <= max_tile, else n."""
    for t in range(max_tile, multiple - 1, -multiple):
        if n % t == 0:
            return t
    return n


# ----------------------------------------------------------------------------
# Kernel 1: per-point visibility (patch z-buffer test).
# grid = (batch, query-tile, key-chunk); key-chunk is an "arbitrary" reduction
# axis carrying a running per-query min depth in VMEM scratch.
# Keys live on the sublane axis ((TK,1) columns straight from the (B,N,3) layout),
# queries on the lane axis ((1,TQ) rows straight from the (B,3,N) layout), so no
# in-kernel transposes are needed and the output is stored lane-dense as (B,1,N).
# ----------------------------------------------------------------------------
def _visibility_kernel(pts_k_ref, pts_q_ref, vis_ref, zmin_ref, *,
                       H, W, r_v, threshold):
    k_idx = pl.program_id(2)

    @pl.when(k_idx == 0)
    def _():
        zmin_ref[...] = jnp.full_like(zmin_ref, _FAR)

    pts_k = pts_k_ref[0]                                            # (TK, 3)
    pts_q = pts_q_ref[0]                                            # (3, TQ)
    x_k, y_k, z_k = pts_k[:, 0:1], pts_k[:, 1:2], pts_k[:, 2:3]     # (TK, 1)
    x_q, y_q = pts_q[0:1, :], pts_q[1:2, :]                         # (1, TQ)

    px_k = jnp.floor(x_k + 0.5)
    py_k = jnp.floor(y_k + 0.5)
    px_q = jnp.floor(x_q + 0.5)
    py_q = jnp.floor(y_q + 0.5)

    inb_k = (px_k >= 0) & (px_k <= W - 1) & (py_k >= 0) & (py_k <= H - 1)   # (TK, 1)

    near = ((jnp.abs(px_k - px_q) <= r_v) &
            (jnp.abs(py_k - py_q) <= r_v) & inb_k)                          # (TK, TQ)
    zq = jnp.where(near, z_k, jnp.float32(_FAR))
    zmin_ref[...] = jnp.minimum(zmin_ref[...],
                                jnp.min(zq, axis=0, keepdims=True))         # (1, TQ)

    @pl.when(k_idx == pl.num_programs(2) - 1)
    def _():
        z_q = pts_q[2:3, :]                                                  # (1, TQ)
        inb_q = (px_q >= 0) & (px_q <= W - 1) & (py_q >= 0) & (py_q <= H - 1)
        vis = inb_q & (z_q <= zmin_ref[...] + threshold)                     # (1, TQ)
        vis_ref[0] = vis.astype(jnp.float32)


# ----------------------------------------------------------------------------
# Kernel 2: rasterization.  Grid over batch; full (H, W) images resident as
# output blocks.  Per-point work is gated on visibility and restricted to an
# 8-aligned STRIP-row slice covering the point's patch.
# ----------------------------------------------------------------------------
def _render_kernel(pv_ref, depth_ref, weight_ref, *, N, H, W, STRIP, r_c, eps):
    b = pl.program_id(0)

    depth_ref[...] = jnp.zeros_like(depth_ref)
    weight_ref[...] = jnp.zeros_like(weight_ref)

    row_base = jax.lax.broadcasted_iota(jnp.int32, (STRIP, W), 0).astype(jnp.float32)
    cols = jax.lax.broadcasted_iota(jnp.int32, (STRIP, W), 1).astype(jnp.float32)

    def body(i, carry):
        x = pv_ref[b, 0, i]
        y = pv_ref[b, 1, i]
        z = pv_ref[b, 2, i]
        v = pv_ref[b, 3, i]

        # Visibility already implies in-bounds -> one cheap scalar gate skips all
        # vector work for invisible / out-of-image points.
        @pl.when(v > 0.5)
        def _():
            px = jnp.floor(x + 0.5)
            py = jnp.floor(y + 0.5)
            # 8-aligned strip of STRIP rows fully covering the (2*r_c+1)-row patch.
            row0 = ((py.astype(jnp.int32) - r_c) // 8) * 8
            row0 = jnp.clip(row0, 0, H - STRIP)
            row0 = pl.multiple_of(row0, 8)

            rows = row_base + row0.astype(jnp.float32)
            mask = (jnp.abs(rows - py) <= r_c) & (jnp.abs(cols - px) <= r_c)
            d2 = (rows - y) ** 2 + (cols - x) ** 2
            w = jnp.where(mask, pl.reciprocal(d2 + eps, approx=True), 0.0)

            d_sl = depth_ref[0, pl.ds(row0, STRIP), :]
            w_sl = weight_ref[0, pl.ds(row0, STRIP), :]
            depth_ref[0, pl.ds(row0, STRIP), :] = d_sl + w * z
            weight_ref[0, pl.ds(row0, STRIP), :] = w_sl + w

        return carry

    jax.lax.fori_loop(0, N, body, 0, unroll=4)


# ----------------------------------------------------------------------------
# Wrapper (glue): layout prep + pallas_call plumbing.
# ----------------------------------------------------------------------------
def point_render_forward(proj_points, image_height, image_width,
                         visible_patch_width, color_path_width,
                         epsilon, threshold, *, query_tile=None, key_tile=None):
    B, N, _ = proj_points.shape
    H, W = int(image_height), int(image_width)
    r_v = visible_patch_width // 2
    r_c = color_path_width // 2

    # Row strip accumulated per point: 8-aligned, covers any (2*r_c+1)-row patch.
    strip = ((8 + 2 * r_c + 7) // 8) * 8
    assert H % 8 == 0 and H >= strip, "image_height must be a multiple of 8 and >= strip"

    # Tiles for the O(N^2) visibility pass: bounded (TK, TQ) intermediates on every
    # TPU generation and a >1-sized parallel grid for megacore / v7x dual-TC.
    if query_tile is None:
        query_tile = _pick_tile(N, 128, 512)     # lane axis: multiple of 128 or N
    if key_tile is None:
        key_tile = _pick_tile(N, 8, 1024)        # sublane axis: multiple of 8 or N
    assert N % query_tile == 0 and N % key_tile == 0
    n_q = N // query_tile
    n_k = N // key_tile

    pts_nc = proj_points.astype(jnp.float32)       # (B, N, 3)  -> key columns
    pts_cn = jnp.transpose(pts_nc, (0, 2, 1))      # (B, 3, N)  -> query rows

    # ---- visibility pass --------------------------------------------------
    vis = pl.pallas_call(
        functools.partial(_visibility_kernel, H=H, W=W, r_v=r_v,
                          threshold=float(threshold)),
        out_shape=jax.ShapeDtypeStruct((B, 1, N), jnp.float32),
        grid_spec=pltpu.PrefetchScalarGridSpec(
            num_scalar_prefetch=0,
            grid=(B, n_q, n_k),
            in_specs=[pl.BlockSpec((1, key_tile, 3), lambda b, q, k: (b, k, 0)),
                      pl.BlockSpec((1, 3, query_tile), lambda b, q, k: (b, 0, q))],
            out_specs=pl.BlockSpec((1, 1, query_tile), lambda b, q, k: (b, 0, q)),
            scratch_shapes=[pltpu.VMEM((1, query_tile), jnp.float32)]),
        compiler_params=pltpu.CompilerParams(
            dimension_semantics=("parallel", "parallel", "arbitrary")),
    )(pts_nc, pts_cn)                               # (B, 1, N), lane-dense

    # Pack points + visibility into one (B, 4, N) array so the raster kernel reads
    # every per-point scalar from a single SMEM stream (half the SMEM padding of
    # separate (B,3,N)+(B,1,N) arrays).
    pv = jnp.concatenate([pts_cn, vis], axis=1)     # (B, 4, N)

    # ---- rasterization pass ------------------------------------------------
    depth_image, weight_image = pl.pallas_call(
        functools.partial(_render_kernel, N=N, H=H, W=W, STRIP=strip,
                          r_c=r_c, eps=float(epsilon)),
        out_shape=(jax.ShapeDtypeStruct((B, H, W), jnp.float32),
                   jax.ShapeDtypeStruct((B, H, W), jnp.float32)),
        grid_spec=pltpu.PrefetchScalarGridSpec(
            num_scalar_prefetch=0,
            grid=(B,),
            in_specs=[pl.BlockSpec(memory_space=pltpu.MemorySpace.SMEM)],
            out_specs=(pl.BlockSpec((1, H, W), lambda b: (b, 0, 0)),
                       pl.BlockSpec((1, H, W), lambda b: (b, 0, 0)))),
        compiler_params=pltpu.CompilerParams(
            dimension_semantics=("parallel",)),
    )(pv)

    is_visible = vis[:, 0, :] > 0.5                 # (B, N) bool
    return depth_image, weight_image, is_visible


class Render:
    """JAX/Pallas equivalent of the PyTorch `Render` module (no learnable params)."""

    def __init__(self, image_height=256, image_width=256,
                 visible_patch_width=5, color_path_width=7, epsilon=1e-5,
                 visibility_query_tile=None, visibility_key_tile=None):
        self.image_height = image_height
        self.image_width = image_width
        self.visible_patch_width = visible_patch_width
        self.color_path_width = color_path_width
        self.epsilon = epsilon
        self.visibility_query_tile = visibility_query_tile
        self.visibility_key_tile = visibility_key_tile

    def __call__(self, proj_points, threshold):
        return point_render_forward(
            proj_points, self.image_height, self.image_width,
            self.visible_patch_width, self.color_path_width,
            self.epsilon, threshold,
            query_tile=self.visibility_query_tile,
            key_tile=self.visibility_key_tile)


# ----------------------------------------------------------------------------
# Pure-JAX reference (same semantics, exact reciprocal) for validation.
# ----------------------------------------------------------------------------
def _reference_forward(proj_points, *, H, W, visible_patch_width,
                       color_path_width, epsilon, threshold):
    pts = proj_points.astype(jnp.float32)
    x, y, z = pts[..., 0], pts[..., 1], pts[..., 2]               # (B, N)
    r_v = visible_patch_width // 2
    r_c = color_path_width // 2

    px = jnp.floor(x + 0.5)
    py = jnp.floor(y + 0.5)
    inb = (px >= 0) & (px <= W - 1) & (py >= 0) & (py <= H - 1)   # (B, N)

    # visibility: [b, query i, key j]
    near = ((jnp.abs(px[:, None, :] - px[:, :, None]) <= r_v) &
            (jnp.abs(py[:, None, :] - py[:, :, None]) <= r_v) &
            inb[:, None, :])
    zq = jnp.where(near, z[:, None, :], jnp.float32(_FAR))
    zmin = jnp.min(zq, axis=2)                                     # (B, N)
    vis = inb & (z <= zmin + threshold)

    rows = jnp.arange(H, dtype=jnp.float32)[:, None]               # (H, 1)
    cols = jnp.arange(W, dtype=jnp.float32)[None, :]               # (1, W)
    mask = ((jnp.abs(rows - py[..., None, None]) <= r_c) &
            (jnp.abs(cols - px[..., None, None]) <= r_c))          # (B, N, H, W)
    d2 = (rows - y[..., None, None]) ** 2 + (cols - x[..., None, None]) ** 2
    w = jnp.where(mask, 1.0 / (d2 + epsilon), 0.0)
    w = w * vis[..., None, None].astype(jnp.float32)
    depth = jnp.sum(w * z[..., None, None], axis=1)
    weight = jnp.sum(w, axis=1)
    return depth, weight, vis


if __name__ == "__main__":
    # Small, deterministic example inputs.
    B, N = 2, 256
    H, W = 64, 128

    key = jax.random.PRNGKey(0)
    kx, ky, kz = jax.random.split(key, 3)
    # x/y in pixel space (a few points intentionally out of bounds), z = depth.
    x = jax.random.uniform(kx, (B, N), jnp.float32, minval=-4.0, maxval=W + 4.0)
    y = jax.random.uniform(ky, (B, N), jnp.float32, minval=-4.0, maxval=H + 4.0)
    z = jax.random.uniform(kz, (B, N), jnp.float32, minval=0.5, maxval=2.0)
    proj_points = jnp.stack([x, y, z], axis=-1)                    # (B, N, 3)

    renderer = Render(image_height=H, image_width=W,
                      visible_patch_width=5, color_path_width=7, epsilon=1e-5,
                      visibility_query_tile=128, visibility_key_tile=128)

    depth_image, weight_image, is_visible = renderer(proj_points, threshold=0.1)
    jax.block_until_ready((depth_image, weight_image, is_visible))

    assert depth_image.shape == (B, H, W)
    assert weight_image.shape == (B, H, W)
    assert is_visible.shape == (B, N)
    assert bool(jnp.all(jnp.isfinite(depth_image)))
    assert bool(jnp.all(jnp.isfinite(weight_image)))

    # Validate against the pure-JAX reference (kernel uses the EUP approx
    # reciprocal, so the images are compared with a loose tolerance).
    d_ref, w_ref, v_ref = jax.jit(functools.partial(
        _reference_forward, H=H, W=W, visible_patch_width=5,
        color_path_width=7, epsilon=1e-5, threshold=0.1))(proj_points)
    jax.block_until_ready((d_ref, w_ref, v_ref))

    assert bool(jnp.array_equal(is_visible, v_ref))
    _close = lambda a, b: bool(jnp.all(jnp.abs(a - b) <= 1e-3 + 3e-2 * jnp.abs(b)))
    assert _close(weight_image, w_ref)
    assert _close(depth_image, d_ref)

    print("KERNEL_OK")
</pallas_src>

<mosaic_0001>
module attributes {stable_mosaic.version = 11 : i64} {
  func.func @_visibility_kernel(%arg0: i32, %arg1: i32, %arg2: i32, %arg3: memref<1x128x3xf32, #tpu.memory_space<vmem>>, %arg4: memref<1x3x128xf32, #tpu.memory_space<vmem>>, %arg5: memref<1x1x128xf32, #tpu.memory_space<vmem>>, %arg6: memref<1x128xf32, #tpu.memory_space<vmem>>) attributes {dimension_semantics = [#tpu.dimension_semantics<parallel>, #tpu.dimension_semantics<parallel>, #tpu.dimension_semantics<arbitrary>], iteration_bounds = array<i64: 2, 2, 2>, scalar_prefetch = 0 : i64, scratch_operands = 1 : i64, tpu.core_type = #tpu.core_type<tc>, window_params = [{transform_indices = @transform_0, window_bounds = array<i64: 1, 128, 3>}, {transform_indices = @transform_1, window_bounds = array<i64: 1, 3, 128>}, {transform_indices = @transform_2, window_bounds = array<i64: 1, 1, 128>}]} {
    %c0_i32 = arith.constant 0 : i32
    %0 = arith.cmpi eq, %arg2, %c0_i32 : i32
    %1 = arith.extui %0 : i1 to i32
    %c0_i32_0 = arith.constant 0 : i32
    %2 = arith.cmpi ne, %1, %c0_i32_0 : i32
    scf.if %2 {
      %cst_22 = arith.constant 1.000000e+30 : f32
      %62 = vector.broadcast %cst_22 : f32 to vector<1x128xf32>
      %c0_23 = arith.constant 0 : index
      %c0_24 = arith.constant 0 : index
      %63 = vector.load %arg6[%c0_23, %c0_24] : memref<1x128xf32, #tpu.memory_space<vmem>>, vector<1x128xf32>
      tpu.vector_store %arg6[%c0_23, %c0_24], %62 {strides = array<i32>} : memref<1x128xf32, #tpu.memory_space<vmem>>, vector<1x128xf32>,
    } else {
    }
    %c0 = arith.constant 0 : index
    %c0_1 = arith.constant 0 : index
    %c0_2 = arith.constant 0 : index
    %3 = vector.load %arg3[%c0, %c0_1, %c0_2] : memref<1x128x3xf32, #tpu.memory_space<vmem>>, vector<1x128x3xf32>
    %4 = vector.shape_cast %3 : vector<1x128x3xf32> to vector<128x3xf32>
    %c0_3 = arith.constant 0 : index
    %c0_4 = arith.constant 0 : index
    %c0_5 = arith.constant 0 : index
    %5 = vector.load %arg4[%c0_3, %c0_4, %c0_5] : memref<1x3x128xf32, #tpu.memory_space<vmem>>, vector<1x3x128xf32>
    %6 = vector.shape_cast %5 : vector<1x3x128xf32> to vector<3x128xf32>
    %7 = vector.extract_strided_slice %4 {offsets = [0, 0], sizes = [128, 1], strides = [1, 1]} : vector<128x3xf32> to vector<128x1xf32>
    %8 = vector.extract_strided_slice %4 {offsets = [0, 1], sizes = [128, 1], strides = [1, 1]} : vector<128x3xf32> to vector<128x1xf32>
    %9 = vector.extract_strided_slice %4 {offsets = [0, 2], sizes = [128, 1], strides = [1, 1]} : vector<128x3xf32> to vector<128x1xf32>
    %10 = vector.extract_strided_slice %6 {offsets = [0, 0], sizes = [1, 128], strides = [1, 1]} : vector<3x128xf32> to vector<1x128xf32>
    %11 = vector.extract_strided_slice %6 {offsets = [1, 0], sizes = [1, 128], strides = [1, 1]} : vector<3x128xf32> to vector<1x128xf32>
    %cst = arith.constant 5.000000e-01 : f32
    %12 = vector.broadcast %cst : f32 to vector<128x1xf32>
    %13 = arith.addf %7, %12 : vector<128x1xf32>
    %14 = math.floor %13 : vector<128x1xf32>
    %cst_6 = arith.constant 5.000000e-01 : f32
    %15 = vector.broadcast %cst_6 : f32 to vector<128x1xf32>
    %16 = arith.addf %8, %15 : vector<128x1xf32>
    %17 = math.floor %16 : vector<128x1xf32>
    %cst_7 = arith.constant 5.000000e-01 : f32
    %18 = vector.broadcast %cst_7 : f32 to vector<1x128xf32>
    %19 = arith.addf %10, %18 : vector<1x128xf32>
    %20 = math.floor %19 : vector<1x128xf32>
    %cst_8 = arith.constant 5.000000e-01 : f32
    %21 = vector.broadcast %cst_8 : f32 to vector<1x128xf32>
    %22 = arith.addf %11, %21 : vector<1x128xf32>
    %23 = math.floor %22 : vector<1x128xf32>
    %cst_9 = arith.constant 0.000000e+00 : f32
    %24 = vector.broadcast %cst_9 : f32 to vector<128x1xf32>
    %25 = arith.cmpf oge, %14, %24 : vector<128x1xf32>
    %cst_10 = arith.constant 1.270000e+02 : f32
    %26 = vector.broadcast %cst_10 : f32 to vector<128x1xf32>
    %27 = arith.cmpf ole, %14, %26 : vector<128x1xf32>
    %28 = arith.andi %25, %27 : vector<128x1xi1>
    %cst_11 = arith.constant 0.000000e+00 : f32
    %29 = vector.broadcast %cst_11 : f32 to vector<128x1xf32>
    %30 = arith.cmpf oge, %17, %29 : vector<128x1xf32>
    %31 = arith.andi %28, %30 : vector<128x1xi1>
    %cst_12 = arith.constant 6.300000e+01 : f32
    %32 = vector.broadcast %cst_12 : f32 to vector<128x1xf32>
    %33 = arith.cmpf ole, %17, %32 : vector<128x1xf32>
    %34 = arith.andi %31, %33 : vector<128x1xi1>
    %35 = vector.broadcast %14 : vector<128x1xf32> to vector<128x128xf32>
    %36 = vector.broadcast %20 : vector<1x128xf32> to vector<128x128xf32>
    %37 = arith.subf %35, %36 : vector<128x128xf32>
    %38 = math.absf %37 : vector<128x128xf32>
    %cst_13 = arith.constant 2.000000e+00 : f32
    %39 = vector.broadcast %cst_13 : f32 to vector<128x128xf32>
    %40 = arith.cmpf ole, %38, %39 : vector<128x128xf32>
    %41 = vector.broadcast %17 : vector<128x1xf32> to vector<128x128xf32>
    %42 = vector.broadcast %23 : vector<1x128xf32> to vector<128x128xf32>
    %43 = arith.subf %41, %42 : vector<128x128xf32>
    %44 = math.absf %43 : vector<128x128xf32>
    %cst_14 = arith.constant 2.000000e+00 : f32
    %45 = vector.broadcast %cst_14 : f32 to vector<128x128xf32>
    %46 = arith.cmpf ole, %44, %45 : vector<128x128xf32>
    %47 = arith.andi %40, %46 : vector<128x128xi1>
    %48 = vector.broadcast %34 : vector<128x1xi1> to vector<128x128xi1>
    %49 = arith.andi %47, %48 : vector<128x128xi1>
    %cst_15 = arith.constant 1.000000e+30 : f32
    %50 = vector.shape_cast %9 : vector<128x1xf32> to vector<128x1xf32>
    %51 = vector.broadcast %50 : vector<128x1xf32> to vector<128x128xf32>
    %52 = vector.broadcast %cst_15 : f32 to vector<128x128xf32>
    %53 = arith.select %49, %51, %52 : vector<128x128xi1>, vector<128x128xf32>
    %c0_16 = arith.constant 0 : index
    %c0_17 = arith.constant 0 : index
    %54 = vector.load %arg6[%c0_16, %c0_17] : memref<1x128xf32, #tpu.memory_space<vmem>>, vector<1x128xf32>
    %cst_18 = arith.constant dense<0x7F800000> : vector<128xf32>
    %55 = vector.multi_reduction <minimumf>, %53, %cst_18 [0] : vector<128x128xf32> to vector<128xf32>
    %56 = vector.shape_cast %55 : vector<128xf32> to vector<1x128xf32>
    %57 = arith.minimumf %54, %56 : vector<1x128xf32>
    %c0_19 = arith.constant 0 : index
    %c0_20 = arith.constant 0 : index
    %58 = vector.load %arg6[%c0_19, %c0_20] : memref<1x128xf32, #tpu.memory_space<vmem>>, vector<1x128xf32>
    tpu.vector_store %arg6[%c0_19, %c0_20], %57 {strides = array<i32>} : memref<1x128xf32, #tpu.memory_space<vmem>>, vector<1x128xf32>,
    %c1_i32 = arith.constant 1 : i32
    %59 = arith.cmpi eq, %arg2, %c1_i32 : i32
    %60 = arith.extui %59 : i1 to i32
    %c0_i32_21 = arith.constant 0 : i32
    %61 = arith.cmpi ne, %60, %c0_i32_21 : i32
    scf.if %61 {
      %62 = vector.extract_strided_slice %6 {offsets = [2, 0], sizes = [1, 128], strides = [1, 1]} : vector<3x128xf32> to vector<1x128xf32>
      %cst_22 = arith.constant 0.000000e+00 : f32
      %63 = vector.broadcast %cst_22 : f32 to vector<1x128xf32>
      %64 = arith.cmpf oge, %20, %63 : vector<1x128xf32>
      %cst_23 = arith.constant 1.270000e+02 : f32
      %65 = vector.broadcast %cst_23 : f32 to vector<1x128xf32>
      %66 = arith.cmpf ole, %20, %65 : vector<1x128xf32>
      %67 = arith.andi %64, %66 : vector<1x128xi1>
      %cst_24 = arith.constant 0.000000e+00 : f32
      %68 = vector.broadcast %cst_24 : f32 to vector<1x128xf32>
      %69 = arith.cmpf oge, %23, %68 : vector<1x128xf32>
      %70 = arith.andi %67, %69 : vector<1x128xi1>
      %cst_25 = arith.constant 6.300000e+01 : f32
      %71 = vector.broadcast %cst_25 : f32 to vector<1x128xf32>
      %72 = arith.cmpf ole, %23, %71 : vector<1x128xf32>
      %73 = arith.andi %70, %72 : vector<1x128xi1>
      %c0_26 = arith.constant 0 : index
      %c0_27 = arith.constant 0 : index
      %74 = vector.load %arg6[%c0_26, %c0_27] : memref<1x128xf32, #tpu.memory_space<vmem>>, vector<1x128xf32>
      %cst_28 = arith.constant 1.000000e-01 : f32
      %75 = vector.broadcast %cst_28 : f32 to vector<1x128xf32>
      %76 = arith.addf %74, %75 : vector<1x128xf32>
      %77 = arith.cmpf ole, %62, %76 : vector<1x128xf32>
      %78 = arith.andi %73, %77 : vector<1x128xi1>
      %79 = arith.extui %78 : vector<1x128xi1> to vector<1x128xi32>
      %80 = arith.sitofp %79 : vector<1x128xi32> to vector<1x128xf32>
      %c0_29 = arith.constant 0 : index
      %c0_30 = arith.constant 0 : index
      %c0_31 = arith.constant 0 : index
      %81 = vector.load %arg5[%c0_29, %c0_30, %c0_31] : memref<1x1x128xf32, #tpu.memory_space<vmem>>, vector<1x1x128xf32>
      %82 = vector.shape_cast %81 : vector<1x1x128xf32> to vector<1x128xf32>
      %83 = vector.shape_cast %80 : vector<1x128xf32> to vector<1x1x128xf32>
      tpu.vector_store %arg5[%c0_29, %c0_30, %c0_31], %83 {strides = array<i32>} : memref<1x1x128xf32, #tpu.memory_space<vmem>>, vector<1x1x128xf32>,
    } else {
    }
    return
  }
  func.func @transform_0(%arg0: i32, %arg1: i32, %arg2: i32) -> (i32, i32, i32) {
    %c0_i32 = arith.constant 0 : i32
    %c0_i32_0 = arith.constant 0 : i32
    return %arg0, %arg2, %c0_i32 : i32, i32, i32
  }
  func.func @transform_1(%arg0: i32, %arg1: i32, %arg2: i32) -> (i32, i32, i32) {
    %c0_i32 = arith.constant 0 : i32
    %c0_i32_0 = arith.constant 0 : i32
    return %arg0, %c0_i32, %arg1 : i32, i32, i32
  }
  func.func @transform_2(%arg0: i32, %arg1: i32, %arg2: i32) -> (i32, i32, i32) {
    %c0_i32 = arith.constant 0 : i32
    %c0_i32_0 = arith.constant 0 : i32
    return %arg0, %c0_i32, %arg1 : i32, i32, i32
  }
}

</mosaic_0001>

<llo_original>
// kernel: tpu_custom_call.1
$region0: #{tpu_custom_call.1}
  #allocation0 [shape = 'u32[]', space=smem, size = 0x4, offset = 0x4, fixed_abs, tag = 'smem constant byte address 0x4 - core index']
  #allocation1 [shape = 'u32[144,128]{1,0:T(1,128)}', space=vmem, size = 0x12000, scoped, tag = 'internal scratch']
  #allocation2 [shape = 'f32[1,128]{1,0:T(1,128)}', space=vmem, size = 0x200, scoped, tag = 'scratch operand']
  %s0 = inlined_call_operand.vmem [shape: f32[2,256,3], index: 0, kind: input, shape index: {}]
  %s1 = inlined_call_operand.vmem [shape: f32[2,3,256], index: 1, kind: input, shape index: {}]
  %s2 = inlined_call_operand.hbm [shape: f32[2,1,256], index: 2, kind: output, shape index: {}]
  %s3 = sld [smem:[#allocation0]]
  $region49: #{tpu_custom_call.1} parent=0
    _
  %s5 = ssub.s32 1, %s3
  %s6 = scalar_select 0, %s5, %s3
  $region1: #{tpu_custom_call.1} parent=0
    #allocation3 [shape = 'u8[1024]{0}', space=vmem, size = 0x400, scoped, tag = 'output window, operand 0']
    #allocation4 [shape = 's32[2]{0}', space=sflag, size = 0x8, scoped, tag = 'scoped memory for tpu_custom_call.1']
    %7 = vsyncpa [#allocation4], 0
    %s8 = scalar_lea.sflag [#allocation4], 1
    %9 = vsyncpa %s8, 0
    loop: start=0, step=1, limit=10
    $region2: #{tpu_custom_call.1} parent=1 // loop_pre_header
      _
    $region3: #{tpu_custom_call.1} parent=1 // loop_header
      %s11 = sphi 0, %s15
      %p12 = scmp.ge.s32.totalorder %s11, 10
      %s18 = sphi 0, %s37
      %s19 = sphi 0, %s33
      %s20 = sphi 0, %s29
      %s21 = sphi 0, %s18
      %s22 = sphi 0, %s19
      %s23 = sphi 0, %s20
      %s24 = sphi 0, %s21
      %s25 = sphi 0, %s22
      %s26 = sphi 0, %s23
      %s42 = sphi 0, %s44
      %s45 = sphi 0, %s42
      %s46 = sphi 0, %s45
      %s62 = sphi 0, %s46
      %s70 = sphi 0, %s72
      %s73 = sphi 0, %s70
      %s74 = sphi 0, %s73
      %s90 = sphi 0, %s74
      %s98 = sphi 0, %s100
      %s101 = sphi 0, %s98
      %s102 = sphi 0, %s101
      %s118 = sphi 0, %s102
    $region4: #{tpu_custom_call.1} parent=1 // loop_header_branch
      %14 = sbr.rel (%p12) target = $region8
    $region5: #{tpu_custom_call.1} parent=1 // loop_body
      %s16 = ssub.s32 %s11, 1
      %s17 = ssub.s32 %s11, 2
      %s27 = sadd.s32 1, %s20
      %p28 = scmp.ge.s32.totalorder %s27, 2
      %s29 = scalar_select %p28, 0, %s27
      %s30 = sadd.s32 1, %s19
      %s31 = scalar_select %p28, %s30, %s19
      %p32 = scmp.ge.s32.totalorder %s31, 2
      %s33 = scalar_select %p32, 0, %s31
      %s34 = sadd.s32 1, %s18
      %s35 = scalar_select %p32, %s34, %s18
      %p36 = scmp.ge.s32.totalorder %s35, 2
      %s37 = scalar_select %p36, 0, %s35
      %s38 = ssub.s32 %s18, %s37
      %s39 = ssub.s32 %s20, %s29
      %s40 = sor.u32 %s38, %s39
      %p41 = scmp.eq.s32.totalorder %s40, 0
      %s43 = sadd.s32 %s42, 1
      %s44 = scalar_select %p41, %s42, %s43
      %p47 = pneg %p41
      %p48 = scmp.eq.s32.totalorder %s11, 7
      %p49 = por %p47, %p48
      %p50 = scmp.ne.s32.totalorder %s42, %s45
      %p51 = scmp.eq.s32.totalorder %s11, 0
      %p52 = por %p50, %p51
      %p53 = scmp.ne.s32.totalorder %s42, %s45
      %p54 = scmp.eq.s32.totalorder %s16, 7
      %p55 = por %p53, %p54
      %p56 = scmp.ne.s32.totalorder %s45, %s46
      %p57 = scmp.eq.s32.totalorder %s16, 0
      %p58 = por %p56, %p57
      %p59 = scmp.ne.s32.totalorder %s45, %s46
      %p60 = scmp.eq.s32.totalorder %s17, 7
      %p61 = por %p59, %p60
      %p63 = scmp.ne.s32.totalorder %s46, %s62
      %p64 = scmp.eq.s32.totalorder %s17, 0
      %p65 = por %p63, %p64
      %s66 = ssub.s32 %s18, %s37
      %s67 = ssub.s32 %s19, %s33
      %s68 = sor.u32 %s66, %s67
      %p69 = scmp.eq.s32.totalorder %s68, 0
      %s71 = sadd.s32 %s70, 1
      %s72 = scalar_select %p69, %s70, %s71
      %p75 = pneg %p69
      %p76 = scmp.eq.s32.totalorder %s11, 7
      %p77 = por %p75, %p76
      %p78 = scmp.ne.s32.totalorder %s70, %s73
      %p79 = scmp.eq.s32.totalorder %s11, 0
      %p80 = por %p78, %p79
      %p81 = scmp.ne.s32.totalorder %s70, %s73
      %p82 = scmp.eq.s32.totalorder %s16, 7
      %p83 = por %p81, %p82
      %p84 = scmp.ne.s32.totalorder %s73, %s74
      %p85 = scmp.eq.s32.totalorder %s16, 0
      %p86 = por %p84, %p85
      %p87 = scmp.ne.s32.totalorder %s73, %s74
      %p88 = scmp.eq.s32.totalorder %s17, 7
      %p89 = por %p87, %p88
      %p91 = scmp.ne.s32.totalorder %s74, %s90
      %p92 = scmp.eq.s32.totalorder %s17, 0
      %p93 = por %p91, %p92
      %s94 = ssub.s32 %s18, %s37
      %s95 = ssub.s32 %s19, %s33
      %s96 = sor.u32 %s94, %s95
      %p97 = scmp.eq.s32.totalorder %s96, 0
      %s99 = sadd.s32 %s98, 1
      %s100 = scalar_select %p97, %s98, %s99
      %p103 = pneg %p97
      %p104 = scmp.eq.s32.totalorder %s11, 7
      %p105 = por %p103, %p104
      %p106 = scmp.ne.s32.totalorder %s98, %s101
      %p107 = scmp.eq.s32.totalorder %s11, 0
      %p108 = por %p106, %p107
      %p109 = scmp.ne.s32.totalorder %s98, %s101
      %p110 = scmp.eq.s32.totalorder %s16, 7
      %p111 = por %p109, %p110
      %p112 = scmp.ne.s32.totalorder %s101, %s102
      %p113 = scmp.eq.s32.totalorder %s16, 0
      %p114 = por %p112, %p113
      %p115 = scmp.ne.s32.totalorder %s101, %s102
      %p116 = scmp.eq.s32.totalorder %s17, 7
      %p117 = por %p115, %p116
      %p119 = scmp.ne.s32.totalorder %s102, %s118
      %p120 = scmp.eq.s32.totalorder %s17, 0
      %p121 = por %p119, %p120
      %p122 = scmp.le.s32.totalorder 1, %s11
      %p123 = scmp.lt.s32.totalorder %s11, 9
      %p124 = pnand %p122, %p123
      %p125 = pneg %p124
      // Predicated region
      $region9: #{tpu_custom_call.1} parent=5 // pred_check
        _
      $region10: #{tpu_custom_call.1} parent=5 // pred_check_branch
        %127 = sbr.rel (%p124) target = $region12
      $region11: #{tpu_custom_call.1} parent=5 // pred_region
        %s128 = ssub.s32 %s11, 1
      $region12: #{tpu_custom_call.1} parent=5 // pred_fallthru
        _
      %p129 = scmp.lt.s32.totalorder %s11, 8
      // Predicated region
      $region13: #{tpu_custom_call.1} parent=5 // pred_check
        %p130 = pneg %p129
      $region14: #{tpu_custom_call.1} parent=5 // pred_check_branch
        %132 = sbr.rel (%p130) target = $region16
      $region15: #{tpu_custom_call.1} parent=5 // pred_region
        // Predicated region
        $region17: #{tpu_custom_call.1} parent=15 // pred_check
          %p133 = pneg %p52
        $region18: #{tpu_custom_call.1} parent=15 // pred_check_branch
          %135 = sbr.rel (%p133) target = $region20
        $region19: #{tpu_custom_call.1} parent=15 // pred_region
          %s136 = smul.u32 16, %s20
          %p137 = scmp.lt.s32.totalorder %s18, 1
          %s138 = scalar_select %p137, %s18, 1
          %p139 = scmp.lt.s32.totalorder %s136, 31
          %s140 = scalar_select %p139, %s136, 31
          %s141 = smul.addr %s138, 32
          %s142 = sadd.s32 %s140, %s141
          %s143 = smul.addr %s142, 8
          %s144 = scalar_lea.vmem %s0, %s143
          %s145 = smul.u32 16, %s20
        $region20: #{tpu_custom_call.1} parent=15 // pred_fallthru
          _
        // Predicated region
        $region21: #{tpu_custom_call.1} parent=15 // pred_check
          %p146 = pneg %p80
        $region22: #{tpu_custom_call.1} parent=15 // pred_check_branch
          %148 = sbr.rel (%p146) target = $region24
        $region23: #{tpu_custom_call.1} parent=15 // pred_region
          %p149 = scmp.lt.s32.totalorder %s18, 1
          %s150 = scalar_select %p149, %s18, 1
          %p151 = scmp.lt.s32.totalorder %s19, 1
          %s152 = scalar_select %p151, %s19, 1
          %s153 = smul.addr %s150, 2
          %s154 = sadd.s32 %s152, %s153
          %s155 = smul.addr %s154, 4
          %s156 = scalar_lea.vmem %s1, %s155
        $region24: #{tpu_custom_call.1} parent=15 // pred_fallthru
          _
      $region16: #{tpu_custom_call.1} parent=5 // pred_fallthru
        _
      %p157 = scmp.le.s32.totalorder 1, %s11
      %p158 = scmp.lt.s32.totalorder %s11, 9
      %p159 = pnand %p157, %p158
      %p160 = pneg %p159
      // Predicated region
      $region25: #{tpu_custom_call.1} parent=5 // pred_check
        _
      $region26: #{tpu_custom_call.1} parent=5 // pred_check_branch
        %162 = sbr.rel (%p159) target = $region28
      $region27: #{tpu_custom_call.1} parent=5 // pred_region
        %s163 = ssub.s32 %s11, 1
        %s164 = smul.u32 16, %s23
        %p165 = scmp.lt.s32.totalorder %s21, 1
        %s166 = scalar_select %p165, %s21, 1
        %p167 = scmp.lt.s32.totalorder %s164, 31
        %s168 = scalar_select %p167, %s164, 31
        %s169 = smul.addr %s166, 32
        %s170 = sadd.s32 %s168, %s169
        %s171 = smul.addr %s170, 8
        %s172 = scalar_lea.vmem %s0, %s171
        %p173 = pneg %p58
        %p174 = pneg %p55
        %p175 = scmp.lt.s32.totalorder %s21, 1
        %s176 = scalar_select %p175, %s21, 1
        %p177 = scmp.lt.s32.totalorder %s22, 1
        %s178 = scalar_select %p177, %s22, 1
        %s179 = smul.addr %s176, 2
        %s180 = sadd.s32 %s178, %s179
        %s181 = smul.addr %s180, 4
        %s182 = scalar_lea.vmem %s1, %s181
        %p183 = pneg %p86
        %p184 = pneg %p83
        %p185 = pneg %p114
        %p186 = pneg %p111
        %s187 = sand.u32 %s101, 1
        %s188 = scalar_lea.sflag [#allocation4], %s187
        %s189 = sand.u32 %s101, 1
        %s190 = scalar_lea.vmem [#allocation3], %s189
        %s191 = smul.u32 16, %s23
        %p192 = scmp.lt.s32.totalorder %s21, 1
        %s193 = scalar_select %p192, %s21, 1
        %p194 = scmp.lt.s32.totalorder %s191, 31
        %s195 = scalar_select %p194, %s191, 31
        %s196 = smul.addr %s193, 32
        %s197 = sadd.s32 %s195, %s196
        %s198 = smul.addr %s197, 8
        %s199 = scalar_lea.vmem %s0, %s198
        %s200 = smul.u32 16, %s23
        %p201 = scmp.lt.s32.totalorder %s21, 1
        %s202 = scalar_select %p201, %s21, 1
        %p203 = scmp.lt.s32.totalorder %s22, 1
        %s204 = scalar_select %p203, %s22, 1
        %s205 = smul.addr %s202, 2
        %s206 = sadd.s32 %s204, %s205
        %s207 = smul.addr %s206, 4
        %s208 = scalar_lea.vmem %s1, %s207
        %p209 = scmp.eq.s32.totalorder %s23, 0
        // Predicated region
        $region29: #{tpu_custom_call.1} parent=27 // pred_check
          %p210 = pneg %p209
        $region30: #{tpu_custom_call.1} parent=27 // pred_check_branch
          %212 = sbr.rel (%p210) target = $region32
        $region31: #{tpu_custom_call.1} parent=27 // pred_region
          %213 = vst [vmem:[#allocation2] sm:$0x1] 1e+30
        $region32: #{tpu_custom_call.1} parent=27 // pred_fallthru
          _
        %v214 = vld [vmem:[%s199] sm:$0xff]
        %v215 = vld [vmem:[%s199 + $0x8] sm:$0xff]
        %v216 = vld [vmem:[%s199 + $0x10] sm:$0xff]
        %v217 = vld [vmem:[%s199 + $0x18] sm:$0xff]
        %v218 = vld [vmem:[%s199 + $0x20] sm:$0xff]
        %v219 = vld [vmem:[%s199 + $0x28] sm:$0xff]
        %v220 = vld [vmem:[%s199 + $0x30] sm:$0xff]
        %v221 = vld [vmem:[%s199 + $0x38] sm:$0xff]
        %v222 = vld [vmem:[%s199 + $0x40] sm:$0xff]
        %v223 = vld [vmem:[%s199 + $0x48] sm:$0xff]
        %v224 = vld [vmem:[%s199 + $0x50] sm:$0xff]
        %v225 = vld [vmem:[%s199 + $0x58] sm:$0xff]
        %v226 = vld [vmem:[%s199 + $0x60] sm:$0xff]
        %v227 = vld [vmem:[%s199 + $0x68] sm:$0xff]
        %v228 = vld [vmem:[%s199 + $0x70] sm:$0xff]
        %v229 = vld [vmem:[%s199 + $0x78] sm:$0xff]
        %v230 = vld [vmem:[%s208] sm:$0x7]
        %v231 = vadd.f32 %v214, 0.5
        %v232 = vadd.f32 %v215, 0.5
        %v233 = vadd.f32 %v216, 0.5
        %v234 = vadd.f32 %v217, 0.5
        %v235 = vadd.f32 %v218, 0.5
        %v236 = vadd.f32 %v219, 0.5
        %v237 = vadd.f32 %v220, 0.5
        %v238 = vadd.f32 %v221, 0.5
        %v239 = vadd.f32 %v222, 0.5
        %v240 = vadd.f32 %v223, 0.5
        %v241 = vadd.f32 %v224, 0.5
        %v242 = vadd.f32 %v225, 0.5
        %v243 = vadd.f32 %v226, 0.5
        %v244 = vadd.f32 %v227, 0.5
        %v245 = vadd.f32 %v228, 0.5
        %v246 = vadd.f32 %v229, 0.5
        %v247 = vfloor.f32 %v231
        %v248 = vfloor.f32 %v232
        %v249 = vfloor.f32 %v233
        %v250 = vfloor.f32 %v234
        %v251 = vfloor.f32 %v235
        %v252 = vfloor.f32 %v236
        %v253 = vfloor.f32 %v237
        %v254 = vfloor.f32 %v238
        %v255 = vfloor.f32 %v239
        %v256 = vfloor.f32 %v240
        %v257 = vfloor.f32 %v241
        %v258 = vfloor.f32 %v242
        %v259 = vfloor.f32 %v243
        %v260 = vfloor.f32 %v244
        %v261 = vfloor.f32 %v245
        %v262 = vfloor.f32 %v246
        %v263 = vadd.f32 %v230, 0.5
        %v264 = vfloor.f32 %v263
        %vm265 = vcmp.ge.f32.partialorder %v247, 0.0
        %vm266 = vcmp.ge.f32.partialorder %v248, 0.0
        %vm267 = vcmp.ge.f32.partialorder %v249, 0.0
        %vm268 = vcmp.ge.f32.partialorder %v250, 0.0
        %vm269 = vcmp.ge.f32.partialorder %v251, 0.0
        %vm270 = vcmp.ge.f32.partialorder %v252, 0.0
        %vm271 = vcmp.ge.f32.partialorder %v253, 0.0
        %vm272 = vcmp.ge.f32.partialorder %v254, 0.0
        %vm273 = vcmp.ge.f32.partialorder %v255, 0.0
        %vm274 = vcmp.ge.f32.partialorder %v256, 0.0
        %vm275 = vcmp.ge.f32.partialorder %v257, 0.0
        %vm276 = vcmp.ge.f32.partialorder %v258, 0.0
        %vm277 = vcmp.ge.f32.partialorder %v259, 0.0
        %vm278 = vcmp.ge.f32.partialorder %v260, 0.0
        %vm279 = vcmp.ge.f32.partialorder %v261, 0.0
        %vm280 = vcmp.ge.f32.partialorder %v262, 0.0
        %vm281 = vcmp.le.f32.partialorder %v247, 127.0
        %vm282 = vcmp.le.f32.partialorder %v248, 127.0
        %vm283 = vcmp.le.f32.partialorder %v249, 127.0
        %vm284 = vcmp.le.f32.partialorder %v250, 127.0
        %vm285 = vcmp.le.f32.partialorder %v251, 127.0
        %vm286 = vcmp.le.f32.partialorder %v252, 127.0
        %vm287 = vcmp.le.f32.partialorder %v253, 127.0
        %vm288 = vcmp.le.f32.partialorder %v254, 127.0
        %vm289 = vcmp.le.f32.partialorder %v255, 127.0
        %vm290 = vcmp.le.f32.partialorder %v256, 127.0
        %vm291 = vcmp.le.f32.partialorder %v257, 127.0
        %vm292 = vcmp.le.f32.partialorder %v258, 127.0
        %vm293 = vcmp.le.f32.partialorder %v259, 127.0
        %vm294 = vcmp.le.f32.partialorder %v260, 127.0
        %vm295 = vcmp.le.f32.partialorder %v261, 127.0
        %vm296 = vcmp.le.f32.partialorder %v262, 127.0
        %vm297 = vmand %vm265, %vm281
        %vm298 = vmand %vm266, %vm282
        %vm299 = vmand %vm267, %vm283
        %vm300 = vmand %vm268, %vm284
        %vm301 = vmand %vm269, %vm285
        %vm302 = vmand %vm270, %vm286
        %vm303 = vmand %vm271, %vm287
        %vm304 = vmand %vm272, %vm288
        %vm305 = vmand %vm273, %vm289
        %vm306 = vmand %vm274, %vm290
        %vm307 = vmand %vm275, %vm291
        %vm308 = vmand %vm276, %vm292
        %vm309 = vmand %vm277, %vm293
        %vm310 = vmand %vm278, %vm294
        %vm311 = vmand %vm279, %vm295
        %vm312 = vmand %vm280, %vm296
        %v313 = vsel %vm265, 1, 0
        %v314 = vsel %vm266, 1, 0
        %v315 = vsel %vm267, 1, 0
        %v316 = vsel %vm268, 1, 0
        %v317 = vsel %vm269, 1, 0
        %v318 = vsel %vm270, 1, 0
        %v319 = vsel %vm271, 1, 0
        %v320 = vsel %vm272, 1, 0
        %v321 = vsel %vm273, 1, 0
        %v322 = vsel %vm274, 1, 0
        %v323 = vsel %vm275, 1, 0
        %v324 = vsel %vm276, 1, 0
        %v325 = vsel %vm277, 1, 0
        %v326 = vsel %vm278, 1, 0
        %v327 = vsel %vm279, 1, 0
        %v328 = vsel %vm280, 1, 0
        %329 = vrot.lane.b32.xlu0 %v313, 127
        %v330 = vpop.permute.xlu0 %329
        %331 = vrot.lane.b32.xlu0 %v314, 127
        %v332 = vpop.permute.xlu0 %331
        %333 = vrot.lane.b32.xlu0 %v315, 127
        %v334 = vpop.permute.xlu0 %333
        %335 = vrot.lane.b32.xlu0 %v316, 127
        %v336 = vpop.permute.xlu0 %335
        %337 = vrot.lane.b32.xlu0 %v317, 127
        %v338 = vpop.permute.xlu0 %337
        %339 = vrot.lane.b32.xlu0 %v318, 127
        %v340 = vpop.permute.xlu0 %339
        %341 = vrot.lane.b32.xlu0 %v319, 127
        %v342 = vpop.permute.xlu0 %341
        %343 = vrot.lane.b32.xlu0 %v320, 127
        %v344 = vpop.permute.xlu0 %343
        %345 = vrot.lane.b32.xlu0 %v321, 127
        %v346 = vpop.permute.xlu0 %345
        %347 = vrot.lane.b32.xlu0 %v322, 127
        %v348 = vpop.permute.xlu0 %347
        %349 = vrot.lane.b32.xlu0 %v323, 127
        %v350 = vpop.permute.xlu0 %349
        %351 = vrot.lane.b32.xlu0 %v324, 127
        %v352 = vpop.permute.xlu0 %351
        %353 = vrot.lane.b32.xlu0 %v325, 127
        %v354 = vpop.permute.xlu0 %353
        %355 = vrot.lane.b32.xlu0 %v326, 127
        %v356 = vpop.permute.xlu0 %355
        %357 = vrot.lane.b32.xlu0 %v327, 127
        %v358 = vpop.permute.xlu0 %357
        %359 = vrot.lane.b32.xlu0 %v328, 127
        %v360 = vpop.permute.xlu0 %359
        %vm361 = vcmp.ne.s32.totalorder %v330, 0
        %vm362 = vcmp.ne.s32.totalorder %v332, 0
        %vm363 = vcmp.ne.s32.totalorder %v334, 0
        %vm364 = vcmp.ne.s32.totalorder %v336, 0
        %vm365 = vcmp.ne.s32.totalorder %v338, 0
        %vm366 = vcmp.ne.s32.totalorder %v340, 0
        %vm367 = vcmp.ne.s32.totalorder %v342, 0
        %vm368 = vcmp.ne.s32.totalorder %v344, 0
        %vm369 = vcmp.ne.s32.totalorder %v346, 0
        %vm370 = vcmp.ne.s32.totalorder %v348, 0
        %vm371 = vcmp.ne.s32.totalorder %v350, 0
        %vm372 = vcmp.ne.s32.totalorder %v352, 0
        %vm373 = vcmp.ne.s32.totalorder %v354, 0
        %vm374 = vcmp.ne.s32.totalorder %v356, 0
        %vm375 = vcmp.ne.s32.totalorder %v358, 0
        %vm376 = vcmp.ne.s32.totalorder %v360, 0
        %vm377 = vmand %vm297, %vm361
        %vm378 = vmand %vm298, %vm362
        %vm379 = vmand %vm299, %vm363
        %vm380 = vmand %vm300, %vm364
        %vm381 = vmand %vm301, %vm365
        %vm382 = vmand %vm302, %vm366
        %vm383 = vmand %vm303, %vm367
        %vm384 = vmand %vm304, %vm368
        %vm385 = vmand %vm305, %vm369
        %vm386 = vmand %vm306, %vm370
        %vm387 = vmand %vm307, %vm371
        %vm388 = vmand %vm308, %vm372
        %vm389 = vmand %vm309, %vm373
        %vm390 = vmand %vm310, %vm374
        %vm391 = vmand %vm311, %vm375
        %vm392 = vmand %vm312, %vm376
        %vm393 = vcmp.le.f32.partialorder %v247, 63.0
        %vm394 = vcmp.le.f32.partialorder %v248, 63.0
        %vm395 = vcmp.le.f32.partialorder %v249, 63.0
        %vm396 = vcmp.le.f32.partialorder %v250, 63.0
        %vm397 = vcmp.le.f32.partialorder %v251, 63.0
        %vm398 = vcmp.le.f32.partialorder %v252, 63.0
        %vm399 = vcmp.le.f32.partialorder %v253, 63.0
        %vm400 = vcmp.le.f32.partialorder %v254, 63.0
        %vm401 = vcmp.le.f32.partialorder %v255, 63.0
        %vm402 = vcmp.le.f32.partialorder %v256, 63.0
        %vm403 = vcmp.le.f32.partialorder %v257, 63.0
        %vm404 = vcmp.le.f32.partialorder %v258, 63.0
        %vm405 = vcmp.le.f32.partialorder %v259, 63.0
        %vm406 = vcmp.le.f32.partialorder %v260, 63.0
        %vm407 = vcmp.le.f32.partialorder %v261, 63.0
        %vm408 = vcmp.le.f32.partialorder %v262, 63.0
        %v409 = vsel %vm393, 1, 0
        %v410 = vsel %vm394, 1, 0
        %v411 = vsel %vm395, 1, 0
        %v412 = vsel %vm396, 1, 0
        %v413 = vsel %vm397, 1, 0
        %v414 = vsel %vm398, 1, 0
        %v415 = vsel %vm399, 1, 0
        %v416 = vsel %vm400, 1, 0
        %v417 = vsel %vm401, 1, 0
        %v418 = vsel %vm402, 1, 0
        %v419 = vsel %vm403, 1, 0
        %v420 = vsel %vm404, 1, 0
        %v421 = vsel %vm405, 1, 0
        %v422 = vsel %vm406, 1, 0
        %v423 = vsel %vm407, 1, 0
        %v424 = vsel %vm408, 1, 0
        %425 = vrot.lane.b32.xlu0 %v409, 127
        %v426 = vpop.permute.xlu0 %425
        %427 = vrot.lane.b32.xlu0 %v410, 127
        %v428 = vpop.permute.xlu0 %427
        %429 = vrot.lane.b32.xlu0 %v411, 127
        %v430 = vpop.permute.xlu0 %429
        %431 = vrot.lane.b32.xlu0 %v412, 127
        %v432 = vpop.permute.xlu0 %431
        %433 = vrot.lane.b32.xlu0 %v413, 127
        %v434 = vpop.permute.xlu0 %433
        %435 = vrot.lane.b32.xlu0 %v414, 127
        %v436 = vpop.permute.xlu0 %435
        %437 = vrot.lane.b32.xlu0 %v415, 127
        %v438 = vpop.permute.xlu0 %437
        %439 = vrot.lane.b32.xlu0 %v416, 127
        %v440 = vpop.permute.xlu0 %439
        %441 = vrot.lane.b32.xlu0 %v417, 127
        %v442 = vpop.permute.xlu0 %441
        %443 = vrot.lane.b32.xlu0 %v418, 127
        %v444 = vpop.permute.xlu0 %443
        %445 = vrot.lane.b32.xlu0 %v419, 127
        %v446 = vpop.permute.xlu0 %445
        %447 = vrot.lane.b32.xlu0 %v420, 127
        %v448 = vpop.permute.xlu0 %447
        %449 = vrot.lane.b32.xlu0 %v421, 127
        %v450 = vpop.permute.xlu0 %449
        %451 = vrot.lane.b32.xlu0 %v422, 127
        %v452 = vpop.permute.xlu0 %451
        %453 = vrot.lane.b32.xlu0 %v423, 127
        %v454 = vpop.permute.xlu0 %453
        %455 = vrot.lane.b32.xlu0 %v424, 127
        %v456 = vpop.permute.xlu0 %455
        %vm457 = vcmp.ne.s32.totalorder %v426, 0
        %vm458 = vcmp.ne.s32.totalorder %v428, 0
        %vm459 = vcmp.ne.s32.totalorder %v430, 0
        %vm460 = vcmp.ne.s32.totalorder %v432, 0
        %vm461 = vcmp.ne.s32.totalorder %v434, 0
        %vm462 = vcmp.ne.s32.totalorder %v436, 0
        %vm463 = vcmp.ne.s32.totalorder %v438, 0
        %vm464 = vcmp.ne.s32.totalorder %v440, 0
        %vm465 = vcmp.ne.s32.totalorder %v442, 0
        %vm466 = vcmp.ne.s32.totalorder %v444, 0
        %vm467 = vcmp.ne.s32.totalorder %v446, 0
        %vm468 = vcmp.ne.s32.totalorder %v448, 0
        %vm469 = vcmp.ne.s32.totalorder %v450, 0
        %vm470 = vcmp.ne.s32.totalorder %v452, 0
        %vm471 = vcmp.ne.s32.totalorder %v454, 0
        %vm472 = vcmp.ne.s32.totalorder %v456, 0
        %vm473 = vmand %vm377, %vm457
        %vm474 = vmand %vm378, %vm458
        %vm475 = vmand %vm379, %vm459
        %vm476 = vmand %vm380, %vm460
        %vm477 = vmand %vm381, %vm461
        %vm478 = vmand %vm382, %vm462
        %vm479 = vmand %vm383, %vm463
        %vm480 = vmand %vm384, %vm464
        %vm481 = vmand %vm385, %vm465
        %vm482 = vmand %vm386, %vm466
        %vm483 = vmand %vm387, %vm467
        %vm484 = vmand %vm388, %vm468
        %vm485 = vmand %vm389, %vm469
        %vm486 = vmand %vm390, %vm470
        %vm487 = vmand %vm391, %vm471
        %vm488 = vmand %vm392, %vm472
        %490 = vset.pattern.permute.xlu0 0
        %491 = vperm.xlu0 %490, %v247
        %v492 = vpop.permute.xlu0 %491
        %495 = vset.pattern.permute.xlu0 0
        %496 = vperm.xlu0 %495, %v248
        %v497 = vpop.permute.xlu0 %496
        %500 = vset.pattern.permute.xlu0 0
        %501 = vperm.xlu0 %500, %v249
        %v502 = vpop.permute.xlu0 %501
        %505 = vset.pattern.permute.xlu0 0
        %506 = vperm.xlu0 %505, %v250
        %v507 = vpop.permute.xlu0 %506
        %510 = vset.pattern.permute.xlu0 0
        %511 = vperm.xlu0 %510, %v251
        %v512 = vpop.permute.xlu0 %511
        %515 = vset.pattern.permute.xlu0 0
        %516 = vperm.xlu0 %515, %v252
        %v517 = vpop.permute.xlu0 %516
        %520 = vset.pattern.permute.xlu0 0
        %521 = vperm.xlu0 %520, %v253
        %v522 = vpop.permute.xlu0 %521
        %525 = vset.pattern.permute.xlu0 0
        %526 = vperm.xlu0 %525, %v254
        %v527 = vpop.permute.xlu0 %526
        %530 = vset.pattern.permute.xlu0 0
        %531 = vperm.xlu0 %530, %v255
        %v532 = vpop.permute.xlu0 %531
        %535 = vset.pattern.permute.xlu0 0
        %536 = vperm.xlu0 %535, %v256
        %v537 = vpop.permute.xlu0 %536
        %540 = vset.pattern.permute.xlu0 0
        %541 = vperm.xlu0 %540, %v257
        %v542 = vpop.permute.xlu0 %541
        %545 = vset.pattern.permute.xlu0 0
        %546 = vperm.xlu0 %545, %v258
        %v547 = vpop.permute.xlu0 %546
        %550 = vset.pattern.permute.xlu0 0
        %551 = vperm.xlu0 %550, %v259
        %v552 = vpop.permute.xlu0 %551
        %555 = vset.pattern.permute.xlu0 0
        %556 = vperm.xlu0 %555, %v260
        %v557 = vpop.permute.xlu0 %556
        %560 = vset.pattern.permute.xlu0 0
        %561 = vperm.xlu0 %560, %v261
        %v562 = vpop.permute.xlu0 %561
        %565 = vset.pattern.permute.xlu0 0
        %566 = vperm.xlu0 %565, %v262
        %v567 = vpop.permute.xlu0 %566
        %v569 = vlaneseq
        %v570 = vshrl.u32 %v569, 7
        %v571 = vsub.s32 0, %v570
        %v572 = vrot.slane %v264, %v571
        %v573 = vsub.f32 %v492, %v572
        %v574 = vsub.f32 %v497, %v572
        %v575 = vsub.f32 %v502, %v572
        %v576 = vsub.f32 %v507, %v572
        %v577 = vsub.f32 %v512, %v572
        %v578 = vsub.f32 %v517, %v572
        %v579 = vsub.f32 %v522, %v572
        %v580 = vsub.f32 %v527, %v572
        %v581 = vsub.f32 %v532, %v572
        %v582 = vsub.f32 %v537, %v572
        %v583 = vsub.f32 %v542, %v572
        %v584 = vsub.f32 %v547, %v572
        %v585 = vsub.f32 %v552, %v572
        %v586 = vsub.f32 %v557, %v572
        %v587 = vsub.f32 %v562, %v572
        %v588 = vsub.f32 %v567, %v572
        %v589 = vand.u32 2147483647, %v573
        %v590 = vand.u32 2147483647, %v574
        %v591 = vand.u32 2147483647, %v575
        %v592 = vand.u32 2147483647, %v576
        %v593 = vand.u32 2147483647, %v577
        %v594 = vand.u32 2147483647, %v578
        %v595 = vand.u32 2147483647, %v579
        %v596 = vand.u32 2147483647, %v580
        %v597 = vand.u32 2147483647, %v581
        %v598 = vand.u32 2147483647, %v582
        %v599 = vand.u32 2147483647, %v583
        %v600 = vand.u32 2147483647, %v584
        %v601 = vand.u32 2147483647, %v585
        %v602 = vand.u32 2147483647, %v586
        %v603 = vand.u32 2147483647, %v587
        %v604 = vand.u32 2147483647, %v588
        %vm605 = vcmp.le.f32.partialorder %v589, 2.0
        %vm606 = vcmp.le.f32.partialorder %v590, 2.0
        %vm607 = vcmp.le.f32.partialorder %v591, 2.0
        %vm608 = vcmp.le.f32.partialorder %v592, 2.0
        %vm609 = vcmp.le.f32.partialorder %v593, 2.0
        %vm610 = vcmp.le.f32.partialorder %v594, 2.0
        %vm611 = vcmp.le.f32.partialorder %v595, 2.0
        %vm612 = vcmp.le.f32.partialorder %v596, 2.0
        %vm613 = vcmp.le.f32.partialorder %v597, 2.0
        %vm614 = vcmp.le.f32.partialorder %v598, 2.0
        %vm615 = vcmp.le.f32.partialorder %v599, 2.0
        %vm616 = vcmp.le.f32.partialorder %v600, 2.0
        %vm617 = vcmp.le.f32.partialorder %v601, 2.0
        %vm618 = vcmp.le.f32.partialorder %v602, 2.0
        %vm619 = vcmp.le.f32.partialorder %v603, 2.0
        %vm620 = vcmp.le.f32.partialorder %v604, 2.0
        %621 = vset.pattern.permute.xlu0 1
        %622 = vperm.xlu0 %621, %v247
        %v623 = vpop.permute.xlu0 %622
        %625 = vset.pattern.permute.xlu0 1
        %626 = vperm.xlu0 %625, %v248
        %v627 = vpop.permute.xlu0 %626
        %629 = vset.pattern.permute.xlu0 1
        %630 = vperm.xlu0 %629, %v249
        %v631 = vpop.permute.xlu0 %630
        %633 = vset.pattern.permute.xlu0 1
        %634 = vperm.xlu0 %633, %v250
        %v635 = vpop.permute.xlu0 %634
        %637 = vset.pattern.permute.xlu0 1
        %638 = vperm.xlu0 %637, %v251
        %v639 = vpop.permute.xlu0 %638
        %641 = vset.pattern.permute.xlu0 1
        %642 = vperm.xlu0 %641, %v252
        %v643 = vpop.permute.xlu0 %642
        %645 = vset.pattern.permute.xlu0 1
        %646 = vperm.xlu0 %645, %v253
        %v647 = vpop.permute.xlu0 %646
        %649 = vset.pattern.permute.xlu0 1
        %650 = vperm.xlu0 %649, %v254
        %v651 = vpop.permute.xlu0 %650
        %653 = vset.pattern.permute.xlu0 1
        %654 = vperm.xlu0 %653, %v255
        %v655 = vpop.permute.xlu0 %654
        %657 = vset.pattern.permute.xlu0 1
        %658 = vperm.xlu0 %657, %v256
        %v659 = vpop.permute.xlu0 %658
        %661 = vset.pattern.permute.xlu0 1
        %662 = vperm.xlu0 %661, %v257
        %v663 = vpop.permute.xlu0 %662
        %665 = vset.pattern.permute.xlu0 1
        %666 = vperm.xlu0 %665, %v258
        %v667 = vpop.permute.xlu0 %666
        %669 = vset.pattern.permute.xlu0 1
        %670 = vperm.xlu0 %669, %v259
        %v671 = vpop.permute.xlu0 %670
        %673 = vset.pattern.permute.xlu0 1
        %674 = vperm.xlu0 %673, %v260
        %v675 = vpop.permute.xlu0 %674
        %677 = vset.pattern.permute.xlu0 1
        %678 = vperm.xlu0 %677, %v261
        %v679 = vpop.permute.xlu0 %678
        %681 = vset.pattern.permute.xlu0 1
        %682 = vperm.xlu0 %681, %v262
        %v683 = vpop.permute.xlu0 %682
        %v685 = vlaneseq
        %v686 = vshrl.u32 %v685, 7
        %v687 = vsub.s32 1, %v686
        %v688 = vrot.slane %v264, %v687
        %v689 = vsub.f32 %v623, %v688
        %v690 = vsub.f32 %v627, %v688
        %v691 = vsub.f32 %v631, %v688
        %v692 = vsub.f32 %v635, %v688
        %v693 = vsub.f32 %v639, %v688
        %v694 = vsub.f32 %v643, %v688
        %v695 = vsub.f32 %v647, %v688
        %v696 = vsub.f32 %v651, %v688
        %v697 = vsub.f32 %v655, %v688
        %v698 = vsub.f32 %v659, %v688
        %v699 = vsub.f32 %v663, %v688
        %v700 = vsub.f32 %v667, %v688
        %v701 = vsub.f32 %v671, %v688
        %v702 = vsub.f32 %v675, %v688
        %v703 = vsub.f32 %v679, %v688
        %v704 = vsub.f32 %v683, %v688
        %v705 = vand.u32 2147483647, %v689
        %v706 = vand.u32 2147483647, %v690
        %v707 = vand.u32 2147483647, %v691
        %v708 = vand.u32 2147483647, %v692
        %v709 = vand.u32 2147483647, %v693
        %v710 = vand.u32 2147483647, %v694
        %v711 = vand.u32 2147483647, %v695
        %v712 = vand.u32 2147483647, %v696
        %v713 = vand.u32 2147483647, %v697
        %v714 = vand.u32 2147483647, %v698
        %v715 = vand.u32 2147483647, %v699
        %v716 = vand.u32 2147483647, %v700
        %v717 = vand.u32 2147483647, %v701
        %v718 = vand.u32 2147483647, %v702
        %v719 = vand.u32 2147483647, %v703
        %v720 = vand.u32 2147483647, %v704
        %vm721 = vcmp.le.f32.partialorder %v705, 2.0
        %vm722 = vcmp.le.f32.partialorder %v706, 2.0
        %vm723 = vcmp.le.f32.partialorder %v707, 2.0
        %vm724 = vcmp.le.f32.partialorder %v708, 2.0
        %vm725 = vcmp.le.f32.partialorder %v709, 2.0
        %vm726 = vcmp.le.f32.partialorder %v710, 2.0
        %vm727 = vcmp.le.f32.partialorder %v711, 2.0
        %vm728 = vcmp.le.f32.partialorder %v712, 2.0
        %vm729 = vcmp.le.f32.partialorder %v713, 2.0
        %vm730 = vcmp.le.f32.partialorder %v714, 2.0
        %vm731 = vcmp.le.f32.partialorder %v715, 2.0
        %vm732 = vcmp.le.f32.partialorder %v716, 2.0
        %vm733 = vcmp.le.f32.partialorder %v717, 2.0
        %vm734 = vcmp.le.f32.partialorder %v718, 2.0
        %vm735 = vcmp.le.f32.partialorder %v719, 2.0
        %vm736 = vcmp.le.f32.partialorder %v720, 2.0
        %vm737 = vmand %vm605, %vm721
        %vm738 = vmand %vm606, %vm722
        %vm739 = vmand %vm607, %vm723
        %vm740 = vmand %vm608, %vm724
        %vm741 = vmand %vm609, %vm725
        %vm742 = vmand %vm610, %vm726
        %vm743 = vmand %vm611, %vm727
        %vm744 = vmand %vm612, %vm728
        %vm745 = vmand %vm613, %vm729
        %vm746 = vmand %vm614, %vm730
        %vm747 = vmand %vm615, %vm731
        %vm748 = vmand %vm616, %vm732
        %vm749 = vmand %vm617, %vm733
        %vm750 = vmand %vm618, %vm734
        %vm751 = vmand %vm619, %vm735
        %vm752 = vmand %vm620, %vm736
        %v753 = vsel %vm473, 1, 0
        %v754 = vsel %vm474, 1, 0
        %v755 = vsel %vm475, 1, 0
        %v756 = vsel %vm476, 1, 0
        %v757 = vsel %vm477, 1, 0
        %v758 = vsel %vm478, 1, 0
        %v759 = vsel %vm479, 1, 0
        %v760 = vsel %vm480, 1, 0
        %v761 = vsel %vm481, 1, 0
        %v762 = vsel %vm482, 1, 0
        %v763 = vsel %vm483, 1, 0
        %v764 = vsel %vm484, 1, 0
        %v765 = vsel %vm485, 1, 0
        %v766 = vsel %vm486, 1, 0
        %v767 = vsel %vm487, 1, 0
        %v768 = vsel %vm488, 1, 0
        %769 = vset.pattern.permute.xlu0 0
        %770 = vperm.xlu0 %769, %v753
        %v771 = vpop.permute.xlu0 %770
        %772 = vset.pattern.permute.xlu0 0
        %773 = vperm.xlu0 %772, %v754
        %v774 = vpop.permute.xlu0 %773
        %775 = vset.pattern.permute.xlu0 0
        %776 = vperm.xlu0 %775, %v755
        %v777 = vpop.permute.xlu0 %776
        %778 = vset.pattern.permute.xlu0 0
        %779 = vperm.xlu0 %778, %v756
        %v780 = vpop.permute.xlu0 %779
        %781 = vset.pattern.permute.xlu0 0
        %782 = vperm.xlu0 %781, %v757
        %v783 = vpop.permute.xlu0 %782
        %784 = vset.pattern.permute.xlu0 0
        %785 = vperm.xlu0 %784, %v758
        %v786 = vpop.permute.xlu0 %785
        %787 = vset.pattern.permute.xlu0 0
        %788 = vperm.xlu0 %787, %v759
        %v789 = vpop.permute.xlu0 %788
        %790 = vset.pattern.permute.xlu0 0
        %791 = vperm.xlu0 %790, %v760
        %v792 = vpop.permute.xlu0 %791
        %793 = vset.pattern.permute.xlu0 0
        %794 = vperm.xlu0 %793, %v761
        %v795 = vpop.permute.xlu0 %794
        %796 = vset.pattern.permute.xlu0 0
        %797 = vperm.xlu0 %796, %v762
        %v798 = vpop.permute.xlu0 %797
        %799 = vset.pattern.permute.xlu0 0
        %800 = vperm.xlu0 %799, %v763
        %v801 = vpop.permute.xlu0 %800
        %802 = vset.pattern.permute.xlu0 0
        %803 = vperm.xlu0 %802, %v764
        %v804 = vpop.permute.xlu0 %803
        %805 = vset.pattern.permute.xlu0 0
        %806 = vperm.xlu0 %805, %v765
        %v807 = vpop.permute.xlu0 %806
        %808 = vset.pattern.permute.xlu0 0
        %809 = vperm.xlu0 %808, %v766
        %v810 = vpop.permute.xlu0 %809
        %811 = vset.pattern.permute.xlu0 0
        %812 = vperm.xlu0 %811, %v767
        %v813 = vpop.permute.xlu0 %812
        %814 = vset.pattern.permute.xlu0 0
        %815 = vperm.xlu0 %814, %v768
        %v816 = vpop.permute.xlu0 %815
        %vm817 = vcmp.eq.s32.totalorder %v771, 1
        %vm818 = vcmp.eq.s32.totalorder %v774, 1
        %vm819 = vcmp.eq.s32.totalorder %v777, 1
        %vm820 = vcmp.eq.s32.totalorder %v780, 1
        %vm821 = vcmp.eq.s32.totalorder %v783, 1
        %vm822 = vcmp.eq.s32.totalorder %v786, 1
        %vm823 = vcmp.eq.s32.totalorder %v789, 1
        %vm824 = vcmp.eq.s32.totalorder %v792, 1
        %vm825 = vcmp.eq.s32.totalorder %v795, 1
        %vm826 = vcmp.eq.s32.totalorder %v798, 1
        %vm827 = vcmp.eq.s32.totalorder %v801, 1
        %vm828 = vcmp.eq.s32.totalorder %v804, 1
        %vm829 = vcmp.eq.s32.totalorder %v807, 1
        %vm830 = vcmp.eq.s32.totalorder %v810, 1
        %vm831 = vcmp.eq.s32.totalorder %v813, 1
        %vm832 = vcmp.eq.s32.totalorder %v816, 1
        %vm833 = vmand %vm737, %vm817
        %vm834 = vmand %vm738, %vm818
        %vm835 = vmand %vm739, %vm819
        %vm836 = vmand %vm740, %vm820
        %vm837 = vmand %vm741, %vm821
        %vm838 = vmand %vm742, %vm822
        %vm839 = vmand %vm743, %vm823
        %vm840 = vmand %vm744, %vm824
        %vm841 = vmand %vm745, %vm825
        %vm842 = vmand %vm746, %vm826
        %vm843 = vmand %vm747, %vm827
        %vm844 = vmand %vm748, %vm828
        %vm845 = vmand %vm749, %vm829
        %vm846 = vmand %vm750, %vm830
        %vm847 = vmand %vm751, %vm831
        %vm848 = vmand %vm752, %vm832
        %850 = vset.pattern.permute.xlu0 2
        %851 = vperm.xlu0 %850, %v214
        %v852 = vpop.permute.xlu0 %851
        %855 = vset.pattern.permute.xlu0 2
        %856 = vperm.xlu0 %855, %v215
        %v857 = vpop.permute.xlu0 %856
        %860 = vset.pattern.permute.xlu0 2
        %861 = vperm.xlu0 %860, %v216
        %v862 = vpop.permute.xlu0 %861
        %865 = vset.pattern.permute.xlu0 2
        %866 = vperm.xlu0 %865, %v217
        %v867 = vpop.permute.xlu0 %866
        %870 = vset.pattern.permute.xlu0 2
        %871 = vperm.xlu0 %870, %v218
        %v872 = vpop.permute.xlu0 %871
        %875 = vset.pattern.permute.xlu0 2
        %876 = vperm.xlu0 %875, %v219
        %v877 = vpop.permute.xlu0 %876
        %880 = vset.pattern.permute.xlu0 2
        %881 = vperm.xlu0 %880, %v220
        %v882 = vpop.permute.xlu0 %881
        %885 = vset.pattern.permute.xlu0 2
        %886 = vperm.xlu0 %885, %v221
        %v887 = vpop.permute.xlu0 %886
        %890 = vset.pattern.permute.xlu0 2
        %891 = vperm.xlu0 %890, %v222
        %v892 = vpop.permute.xlu0 %891
        %895 = vset.pattern.permute.xlu0 2
        %896 = vperm.xlu0 %895, %v223
        %v897 = vpop.permute.xlu0 %896
        %900 = vset.pattern.permute.xlu0 2
        %901 = vperm.xlu0 %900, %v224
        %v902 = vpop.permute.xlu0 %901
        %905 = vset.pattern.permute.xlu0 2
        %906 = vperm.xlu0 %905, %v225
        %v907 = vpop.permute.xlu0 %906
        %910 = vset.pattern.permute.xlu0 2
        %911 = vperm.xlu0 %910, %v226
        %v912 = vpop.permute.xlu0 %911
        %915 = vset.pattern.permute.xlu0 2
        %916 = vperm.xlu0 %915, %v227
        %v917 = vpop.permute.xlu0 %916
        %920 = vset.pattern.permute.xlu0 2
        %921 = vperm.xlu0 %920, %v228
        %v922 = vpop.permute.xlu0 %921
        %925 = vset.pattern.permute.xlu0 2
        %926 = vperm.xlu0 %925, %v229
        %v927 = vpop.permute.xlu0 %926
        %v929 = vsel %vm833, %v852, 1e+30
        %v930 = vsel %vm834, %v857, 1e+30
        %v931 = vsel %vm835, %v862, 1e+30
        %v932 = vsel %vm836, %v867, 1e+30
        %v933 = vsel %vm837, %v872, 1e+30
        %v934 = vsel %vm838, %v877, 1e+30
        %v935 = vsel %vm839, %v882, 1e+30
        %v936 = vsel %vm840, %v887, 1e+30
        %v937 = vsel %vm841, %v892, 1e+30
        %v938 = vsel %vm842, %v897, 1e+30
        %v939 = vsel %vm843, %v902, 1e+30
        %v940 = vsel %vm844, %v907, 1e+30
        %v941 = vsel %vm845, %v912, 1e+30
        %v942 = vsel %vm846, %v917, 1e+30
        %v943 = vsel %vm847, %v922, 1e+30
        %v944 = vsel %vm848, %v927, 1e+30
        %v945 = vld [vmem:[#allocation2] sm:$0x1]
        %v946 = vmin.f32 %v929, %v933
        %v947 = vmin.f32 %v930, %v934
        %v948 = vmin.f32 %v931, %v935
        %v949 = vmin.f32 %v932, %v936
        %v950 = vmin.f32 %v946, %v937
        %v951 = vmin.f32 %v947, %v938
        %v952 = vmin.f32 %v948, %v939
        %v953 = vmin.f32 %v949, %v940
        %v954 = vmin.f32 %v950, %v941
        %v955 = vmin.f32 %v951, %v942
        %v956 = vmin.f32 %v952, %v943
        %v957 = vmin.f32 %v953, %v944
        %v958 = vmin.f32 %v954, %v955
        %v959 = vmin.f32 %v956, %v957
        %v960 = vmin.f32 %v958, %v959
        %v961 = vrot.slane %v960, 4
        %v962 = vmin.f32 %v960, %v961
        %v963 = vrot.slane %v962, 2
        %v964 = vmin.f32 %v962, %v963
        %v965 = vrot.slane %v964, 1
        %v966 = vmin.f32 %v964, %v965
        %v967 = vmin.f32 %v945, %v966
        %968 = vst [vmem:[#allocation2] sm:$0x1] %v967
        %p969 = scmp.eq.s32.totalorder %s23, 1
        // Predicated region
        $region33: #{tpu_custom_call.1} parent=27 // pred_check
          %p970 = pneg %p969
        $region34: #{tpu_custom_call.1} parent=27 // pred_check_branch
          %972 = sbr.rel (%p970) target = $region36
        $region35: #{tpu_custom_call.1} parent=27 // pred_region
          %vm973 = vcmp.ge.f32.partialorder %v264, 0.0
          %vm974 = vcmp.le.f32.partialorder %v264, 127.0
          %vm975 = vmand %vm973, %vm974
          %v976 = vsel %vm973, 1, 0
          %v977 = vrot.slane %v976, 1
          %vm978 = vcmp.ne.s32.totalorder %v977, 0
          %vm979 = vmand %vm975, %vm978
          %vm980 = vcmp.le.f32.partialorder %v264, 63.0
          %v981 = vsel %vm980, 1, 0
          %v982 = vrot.slane %v981, 1
          %vm983 = vcmp.ne.s32.totalorder %v982, 0
          %vm984 = vmand %vm979, %vm983
          %v985 = vld [vmem:[#allocation2] sm:$0x1]
          %v986 = vadd.f32 %v985, 0.1
          %v988 = vlaneseq
          %v989 = vshrl.u32 %v988, 7
          %v990 = vsub.s32 0, %v989
          %v991 = vrot.slane %v986, %v990
          %vm993 = vcmp.le.f32.partialorder %v230, %v991
          %v994 = vsel %vm993, 1, 0
          %v995 = vrot.slane %v994, 2
          %vm996 = vcmp.ne.s32.totalorder %v995, 0
          %vm997 = vmand %vm984, %vm996
          %v998 = vsel %vm997, 1, 0
          %v999 = vcvt.s32.f32 %v998
          %1000 = vst [vmem:[%s190] sm:$0x1] %v999
        $region36: #{tpu_custom_call.1} parent=27 // pred_fallthru
          _
        %s1001 = sand.u32 %s101, 1
        %s1002 = scalar_lea.sflag [#allocation4], %s1001
        %s1003 = sand.u32 %s101, 1
        %s1004 = scalar_lea.vmem [#allocation3], %s1003
        // Predicated region
        $region37: #{tpu_custom_call.1} parent=27 // pred_check
          %p1005 = pneg %p111
        $region38: #{tpu_custom_call.1} parent=27 // pred_check_branch
          %1007 = sbr.rel (%p1005) target = $region40
        $region39: #{tpu_custom_call.1} parent=27 // pred_region
          %s1009 = ssub.s32 16, 16
          %1010 = vsyncadd %s1002, %s1009
          %s1011 = smul.addr %s21, 2
          %s1012 = sadd.s32 %s22, %s1011
          %s1013 = smul.addr %s1012, 16
          %s1014 = scalar_lea.hbm %s2, %s1013
          %s1016 = sshll.u32 %s1004, 4
          %s1017 = int_to_ptr.vmem [resolvable:$true] %s1016
          %1019 = dma.vmem_to_hbm [thread:$0]  %s1017, 16, %s1014, %s1002
        $region40: #{tpu_custom_call.1} parent=27 // pred_fallthru
          _
      $region28: #{tpu_custom_call.1} parent=5 // pred_fallthru
        _
      %p1020 = scmp.le.s32.totalorder 2, %s11
      // Predicated region
      $region41: #{tpu_custom_call.1} parent=5 // pred_check
        %p1021 = pneg %p1020
      $region42: #{tpu_custom_call.1} parent=5 // pred_check_branch
        %1023 = sbr.rel (%p1021) target = $region44
      $region43: #{tpu_custom_call.1} parent=5 // pred_region
        %s1024 = ssub.s32 %s11, 2
        // Predicated region
        $region45: #{tpu_custom_call.1} parent=43 // pred_check
          %p1025 = pneg %p117
        $region46: #{tpu_custom_call.1} parent=43 // pred_check_branch
          %1027 = sbr.rel (%p1025) target = $region48
        $region47: #{tpu_custom_call.1} parent=43 // pred_region
          %s1028 = sand.u32 %s102, 1
          %s1029 = scalar_lea.sflag [#allocation4], %s1028
          %s1030 = sand.u32 %s102, 1
          %s1031 = scalar_lea.vmem [#allocation3], %s1030
          %1032 = dma.done %s1029, 16
        $region48: #{tpu_custom_call.1} parent=43 // pred_fallthru
          _
      $region44: #{tpu_custom_call.1} parent=5 // pred_fallthru
        _
    $region6: #{tpu_custom_call.1} parent=1 // loop_footer
      %s15 = sadd.s32 1, %s11
    $region7: #{tpu_custom_call.1} parent=1 // loop_footer_branch
      %10 = sbr.rel target = $region3
    $region8: #{tpu_custom_call.1} parent=1 // loop_exit
      _
    %1033 = vsyncpa [#allocation4], 1
    %s1034 = scalar_lea.sflag [#allocation4], 1
    %1035 = vsyncpa %s1034, 1

</llo_original>
